<compile_context>
chip_gen: v5e
topology: v5e:2x2
jax: 0.10.0
libtpu: 0.0.40
codegen_flags: <defaults>
</compile_context>

<pallas_src>
import jax
import jax.numpy as jnp
from jax.experimental import pallas as pl
from jax.experimental.pallas import tpu as pltpu

_LANE = 128
# Per-block footprint cap.  With double-buffered input + output this keeps
# <= ~4x this amount live in VMEM: 16 MiB, inside the 32 MiB default scoped
# limit on v6e/v7x and far inside v5e/v6e's 128 MiB physical VMEM.
_BLOCK_BYTES_CAP = 4 * 1024 * 1024


def _copy_kernel(x_ref, o_ref):
    # Whole-tile copy.  No extra elementwise work: for a copy the vector-store
    # slot is the binding resource, so anything added here would lengthen the
    # critical slot instead of hiding under slack.
    o_ref[...] = x_ref[...]


def _sublane_align(itemsize: int) -> int:
    """Native second-minor tile size: 8 for f32, 16 for bf16, 32 for int8."""
    return max(8, 32 // max(1, itemsize))


def _pick_layout(total_elems: int, itemsize: int):
    """Choose a lane-dense 2D view (rows, cols) and an exact row tile size.

    Returns (rows, cols, tile_rows) or None if the element count cannot be
    reshaped into sublane/lane-aligned tiles.
    """
    sub = _sublane_align(itemsize)
    candidates = []
    for k in (8, 4, 2, 1):  # prefer the widest (lane-dense) last dim
        cols = _LANE * k
        if total_elems % cols:
            continue
        rows = total_elems // cols
        if rows % sub:
            continue
        candidates.append((rows, cols))
    if not candidates:
        return None
    rows, cols = candidates[0]

    # Largest sublane-aligned row tile that (a) divides rows exactly and
    # (b) keeps the block under the VMEM budget.  Small arrays -> 1 grid step
    # (no per-step overhead); large arrays -> multiple steps for DMA overlap.
    cap_rows = max(sub, (_BLOCK_BYTES_CAP // (cols * itemsize)) // sub * sub)
    tile_rows = max(sub, (min(rows, cap_rows) // sub) * sub)
    while rows % tile_rows:  # walk down to an exact divisor (terminates at sub)
        tile_rows -= sub
    return rows, cols, tile_rows


def _tiled_identity(x2: jax.Array, tile_rows: int) -> jax.Array:
    rows, cols = x2.shape
    assert rows % tile_rows == 0, "tile_rows must divide rows exactly"
    grid = (rows // tile_rows,)
    block_bytes = tile_rows * cols * x2.dtype.itemsize
    return pl.pallas_call(
        _copy_kernel,
        out_shape=jax.ShapeDtypeStruct((rows, cols), x2.dtype),
        grid=grid,
        in_specs=[pl.BlockSpec((tile_rows, cols), lambda i: (i, 0))],
        out_specs=pl.BlockSpec((tile_rows, cols), lambda i: (i, 0)),
        compiler_params=pltpu.CompilerParams(
            dimension_semantics=("parallel",),
            vmem_limit_bytes=min(48 * 1024 * 1024,
                                 max(16 * 1024 * 1024, 6 * block_bytes)),
        ),
    )(x2)


@jax.jit
def generator_base_forward(x: jax.Array) -> jax.Array:
    """Identity 'forward' of GeneratorBase implemented as a Pallas kernel.

    Returns an array with identical shape/dtype/values as `x`.
    """
    layout = _pick_layout(x.size, x.dtype.itemsize)
    if layout is None:
        # Too ragged for (sublane,128)-aligned tiles: the identity needs no
        # compute, so the cheapest correct implementation is to return x
        # directly (zero HBM traffic).
        return x
    rows, cols, tile_rows = layout
    x2 = x.reshape(rows, cols)  # lane-dense 2D view, last dim multiple of 128
    out2 = _tiled_identity(x2, tile_rows)
    return out2.reshape(x.shape)


class GeneratorBaseJAX:
    """JAX mirror of GeneratorBase: no parameters, abstract forward."""

    def __init__(self, args):
        self.args = args

    def train_step(self):
        raise NotImplementedError()

    def forward(self, x):
        # The PyTorch base raises NotImplementedError; here we expose the
        # Pallas identity pass-through so the kernel path is exercised.
        return generator_base_forward(x)

    def save(self, path):
        # No state_dict (module has no parameters/buffers); nothing to save.
        pass


if __name__ == "__main__":
    key = jax.random.PRNGKey(0)
    # Small NCHW input consistent with a generator-style module.
    x = jax.random.normal(key, (2, 4, 16, 16), dtype=jnp.float32)

    model = GeneratorBaseJAX(args=None)
    y = model.forward(x)
    jax.block_until_ready(y)

    # Identity semantics check.
    assert y.shape == x.shape and y.dtype == x.dtype
    assert bool(jnp.allclose(y, x))

    print("KERNEL_OK")
</pallas_src>

<mosaic_0001>
module attributes {stable_mosaic.version = 11 : i64} {
  func.func @_copy_kernel(%arg0: i32, %arg1: memref<8x256xf32, #tpu.memory_space<vmem>>, %arg2: memref<8x256xf32, #tpu.memory_space<vmem>>) attributes {dimension_semantics = [#tpu.dimension_semantics<parallel>], iteration_bounds = array<i64: 1>, scalar_prefetch = 0 : i64, scratch_operands = 0 : i64, tpu.core_type = #tpu.core_type<tc>, window_params = [{transform_indices = @transform_0, window_bounds = array<i64: 8, 256>}, {transform_indices = @transform_1, window_bounds = array<i64: 8, 256>}]} {
    %c0 = arith.constant 0 : index
    %c0_0 = arith.constant 0 : index
    %0 = vector.load %arg1[%c0, %c0_0] : memref<8x256xf32, #tpu.memory_space<vmem>>, vector<8x256xf32>
    %c0_1 = arith.constant 0 : index
    %c0_2 = arith.constant 0 : index
    %1 = vector.load %arg2[%c0_1, %c0_2] : memref<8x256xf32, #tpu.memory_space<vmem>>, vector<8x256xf32>
    tpu.vector_store %arg2[%c0_1, %c0_2], %0 {strides = array<i32>} : memref<8x256xf32, #tpu.memory_space<vmem>>, vector<8x256xf32>,
    return
  }
  func.func @transform_0(%arg0: i32) -> (i32, i32) {
    %c0_i32 = arith.constant 0 : i32
    %c0_i32_0 = arith.constant 0 : i32
    return %arg0, %c0_i32 : i32, i32
  }
  func.func @transform_1(%arg0: i32) -> (i32, i32) {
    %c0_i32 = arith.constant 0 : i32
    %c0_i32_0 = arith.constant 0 : i32
    return %arg0, %c0_i32 : i32, i32
  }
}

</mosaic_0001>

<llo_original>
// kernel: generator_base_forward.1
$region0: #{generator_base_forward.1}
  #allocation0 [shape = 'u32[]', space=smem, size = 0x4, offset = 0x4, fixed_abs, tag = 'smem constant byte address 0x4 - core index']
  #allocation1 [shape = 'u32[72,128]{1,0:T(1,128)}', space=vmem, size = 0x9000, scoped, tag = 'internal scratch']
  %s0 = inlined_call_operand.vmem [shape: f32[8,256], index: 0, kind: input, shape index: {}]
  %s1 = inlined_call_operand.vmem [shape: f32[8,256], index: 1, kind: output, shape index: {}]
  %s2 = sld [smem:[#allocation0]]
  $region14: #{generator_base_forward.1} parent=0
    _
  %s4 = ssub.s32 1, %s2
  %s5 = scalar_select 0, %s4, %s2
  // Predicated region
  $region2: #{generator_base_forward.1} parent=0 // pred_check
    _
  $region3: #{generator_base_forward.1} parent=0 // pred_check_branch
    %7 = sbr.rel (0) target = $region5
  $region4: #{generator_base_forward.1} parent=0 // pred_region
    _
  $region5: #{generator_base_forward.1} parent=0 // pred_fallthru
    _
  %v8 = vld [vmem:[%s0] sm:$0xff]
  %v9 = vld [vmem:[%s0 + $0x8] sm:$0xff]
  %10 = vst [vmem:[%s1] sm:$0xff] %v8
  %11 = vst [vmem:[%s1 + $0x8] sm:$0xff] %v9
  // Predicated region
  $region6: #{generator_base_forward.1} parent=0 // pred_check
    _
  $region7: #{generator_base_forward.1} parent=0 // pred_check_branch
    %13 = sbr.rel (0) target = $region9
  $region8: #{generator_base_forward.1} parent=0 // pred_region
    _
  $region9: #{generator_base_forward.1} parent=0 // pred_fallthru
    _
  // Predicated region
  $region10: #{generator_base_forward.1} parent=0 // pred_check
    _
  $region11: #{generator_base_forward.1} parent=0 // pred_check_branch
    %15 = sbr.rel (0) target = $region13
  $region12: #{generator_base_forward.1} parent=0 // pred_region
    _
  $region13: #{generator_base_forward.1} parent=0 // pred_fallthru
    _

</llo_original>
